<compile_context>
chip_gen: v5e
topology: v5e:2x2
jax: 0.10.0
libtpu: 0.0.40
codegen_flags: <defaults>
</compile_context>

<pallas_src>
import functools

import jax
import jax.numpy as jnp
from jax import lax
from jax.experimental import pallas as pl
from jax.experimental.pallas import tpu as pltpu


_LANE = 128
_SUBLANE = 8
# Scoped-VMEM limit safe on every current generation (v7x has 64 MiB / TC).
_VMEM_LIMIT_BYTES = 48 * 1024 * 1024
# Working-set budget the tile pickers target (headroom below the limit above).
_VMEM_TILE_BUDGET = 40 * 1024 * 1024


def _round_up(x, m):
    return ((x + m - 1) // m) * m


# --------------------------------------------------------------------------
# Stage 1: reward-matrix kernels (frame axis collapsed before the matmul)
# --------------------------------------------------------------------------
def _reward_t_kernel(vis_ref, txt_ref, out_ref, *, F, D, logit_scale,
                     mxu_dtype, approx_recip):
    """DecisionNCE-T: reward rows = (sum_f normalized frame-diff) @ tn^T * scale.

    vis_ref: (TB, F*D) raw visual features (bf16/f32); frames are lane-contiguous
             so each frame slice is a static, lane-aligned D-wide load.
    txt_ref: (B_pad, D) pre-normalized text embeddings, already in mxu_dtype.
    out_ref: (TB, B_pad) f32 reward rows (lane-dense store).
    """
    TB = vis_ref.shape[0]
    tn = txt_ref[...].astype(mxu_dtype)

    # Running accumulation over frame diffs: only a couple of (TB, D) f32
    # values live at any time.
    prev = vis_ref[:, pl.ds(0, D)].astype(jnp.float32)
    acc = jnp.zeros((TB, D), jnp.float32)
    for f in range(1, F):                      # F is small and static: unrolled
        cur = vis_ref[:, pl.ds(f * D, D)].astype(jnp.float32)
        d = cur - prev
        nrm = jnp.sqrt(jnp.sum(d * d, axis=-1, keepdims=True))
        # approx=True lowers to the (otherwise idle) EUP slot; approx=False is
        # kept for the bit-closest comparison against the torch reference.
        acc = acc + d * pl.reciprocal(nrm + 1e-6, approx=approx_recip)
        prev = cur

    # Single MXU contraction over the last dims (no explicit transpose of tn).
    reward = lax.dot_general(acc.astype(mxu_dtype), tn,
                             (((1,), (1,)), ((), ())),
                             preferred_element_type=jnp.float32)   # (TB, B_pad)
    out_ref[...] = (reward * logit_scale).astype(out_ref.dtype)


def _reward_p_kernel(vis_ref, txt_ref, out_ref, *, F, D, logit_scale, mxu_dtype):
    """DecisionNCE-P: reward rows = (sum_{f>=F/2} vn_f - sum_{f<F/2} vn_f) @ tn^T * scale."""
    TB = vis_ref.shape[0]
    tn = txt_ref[...].astype(mxu_dtype)
    half = F // 2                              # even F enforced by the wrapper

    acc = jnp.zeros((TB, D), jnp.float32)
    for f in range(F):
        x = vis_ref[:, pl.ds(f * D, D)].astype(jnp.float32)
        xn = x * lax.rsqrt(jnp.sum(x * x, axis=-1, keepdims=True))
        acc = acc + (xn if f >= half else -xn)

    reward = lax.dot_general(acc.astype(mxu_dtype), tn,
                             (((1,), (1,)), ((), ())),
                             preferred_element_type=jnp.float32)   # (TB, B_pad)
    out_ref[...] = (reward * logit_scale).astype(out_ref.dtype)


# --------------------------------------------------------------------------
# Stage 2: symmetric cross-entropy, row-tiled + online column logsumexp
# --------------------------------------------------------------------------
def _sym_ce_kernel(r_ref, out_ref, colmax_ref, colsum_ref, rowlse_ref, diag_ref,
                   *, n_valid):
    step = pl.program_id(0)
    TB, Bp = r_ref.shape

    @pl.when(step == 0)
    def _():
        colmax_ref[...] = jnp.full(colmax_ref.shape, -jnp.inf, colmax_ref.dtype)
        colsum_ref[...] = jnp.zeros(colsum_ref.shape, colsum_ref.dtype)
        rowlse_ref[...] = jnp.zeros(rowlse_ref.shape, rowlse_ref.dtype)
        diag_ref[...] = jnp.zeros(diag_ref.shape, diag_ref.dtype)

    r = r_ref[...].astype(jnp.float32)                         # (TB, Bp)
    cols = lax.broadcasted_iota(jnp.int32, (TB, Bp), 1)
    if Bp > n_valid:
        # Padded reward columns: large finite negative so exp() underflows to 0
        # (and we avoid -inf - -inf = NaN in the running column pass).
        r = jnp.where(cols < n_valid, r, -1e30)

    # Rows owned by this tile: row-wise logsumexp + diagonal logits.
    m_r = jnp.max(r, axis=1, keepdims=True)                    # (TB, 1)
    lse_r = m_r + jnp.log(jnp.sum(jnp.exp(r - m_r), axis=1, keepdims=True))
    rowlse_ref[...] = rowlse_ref[...] + jnp.sum(lse_r, keepdims=True)

    row_ids = step * TB + lax.broadcasted_iota(jnp.int32, (TB, Bp), 0)
    diag_ref[...] = diag_ref[...] + jnp.sum(
        jnp.where(cols == row_ids, r, 0.0), keepdims=True)

    # Online (flash-style) column logsumexp accumulation.
    m_old = colmax_ref[...]                                    # (1, Bp)
    m_new = jnp.maximum(m_old, jnp.max(r, axis=0, keepdims=True))
    colsum_ref[...] = (colsum_ref[...] * jnp.exp(m_old - m_new)
                       + jnp.sum(jnp.exp(r - m_new), axis=0, keepdims=True))
    colmax_ref[...] = m_new

    @pl.when(step == pl.num_programs(0) - 1)
    def _():
        col_lse = colmax_ref[...] + jnp.log(colsum_ref[...])   # (1, Bp)
        if Bp > n_valid:
            valid = lax.broadcasted_iota(jnp.int32, (1, Bp), 1) < n_valid
            col_lse = jnp.where(valid, col_lse, 0.0)
        loss = (0.5 * (rowlse_ref[...] + jnp.sum(col_lse, keepdims=True))
                - diag_ref[...]) / n_valid
        out_ref[...] = loss


# --------------------------------------------------------------------------
# Tile pickers
# --------------------------------------------------------------------------
def _pick_batch_tile(B, B_pad, F, D, vis_bytes, txt_bytes,
                     vmem_budget=_VMEM_TILE_BUDGET):
    """Largest batch tile (divisor of B, sublane-aligned) fitting the budget,
    preferring tiles that leave >= 2 grid steps (v7x megacore + DMA overlap)."""

    def usage(tb):
        vis = 2 * tb * F * D * vis_bytes            # double-buffered streamed tile
        txt = 2 * B_pad * D * txt_bytes             # resident normalized text
        out = 2 * tb * B_pad * 4                    # double-buffered f32 reward rows
        tmp = 8 * tb * D * 4 + 2 * tb * B_pad * 4   # in-kernel f32 live values
        return vis + txt + out + tmp

    cands = [t for t in range(B, 0, -1)
             if B % t == 0 and (t % _SUBLANE == 0 or t == B)]
    # Largest-first within the >=2-step group (for power-of-two batches this
    # naturally yields 128/256-aligned tiles), then the single-step fallback.
    ordered = [t for t in cands if B // t >= 2] + [t for t in cands if B // t < 2]
    for t in ordered:
        if usage(t) <= vmem_budget:
            return t
    return min(cands)


def _pick_row_tile(B, B_pad, vmem_budget=32 * 1024 * 1024):
    def usage(t):
        return 2 * t * B_pad * 4 + 6 * t * B_pad * 4 + 4 * B_pad * 4 + 256

    cands = [t for t in range(B, 0, -1)
             if B % t == 0 and (t % _SUBLANE == 0 or t == B)]
    for t in cands:
        if usage(t) <= vmem_budget:
            return t
    return min(cands)


# --------------------------------------------------------------------------
# Wrapper
# --------------------------------------------------------------------------
def decision_nce_loss(visual_features, text_features, *, logit_scale=100.0,
                      loss_type="DecisionNCE-T", batch_tile=None,
                      input_dtype=jnp.bfloat16, mxu_dtype=jnp.bfloat16,
                      approx_recip=True):
    assert loss_type in ("DecisionNCE-T", "DecisionNCE-P"), \
        f"Unknown loss type: {loss_type}"
    B, F, D = visual_features.shape
    assert text_features.shape == (B, D)
    if loss_type == "DecisionNCE-P":
        # torch.chunk(., 2, dim=0) only yields equal-shape chunks for even F.
        assert F % 2 == 0, "DecisionNCE-P requires an even number of frames"
    else:
        assert F >= 2, "DecisionNCE-T requires at least 2 frames"

    B_pad = _round_up(B, _LANE)   # lane-dense reward stores + MXU-friendly N dim

    # Normalize the text ONCE (instead of every grid step), zero-pad its rows to
    # a 128 multiple, and ship it in the MXU dtype so the kernel never reworks it.
    tn = text_features.astype(jnp.float32)
    tn = tn / jnp.linalg.norm(tn, axis=-1, keepdims=True)
    if B_pad != B:
        tn = jnp.pad(tn, ((0, B_pad - B), (0, 0)))
    tn = tn.astype(mxu_dtype)

    # bf16 inputs halve the dominant HBM read (the visual tensor); normalization
    # math stays f32 in-kernel.  (F, D) is flattened so per-frame slices are
    # static lane-aligned loads with batch already on sublanes (matmul-LHS ready).
    vis = visual_features.astype(input_dtype).reshape(B, F * D)

    if batch_tile is None:
        batch_tile = _pick_batch_tile(B, B_pad, F, D,
                                      jnp.dtype(input_dtype).itemsize,
                                      jnp.dtype(mxu_dtype).itemsize)
    assert B % batch_tile == 0
    assert batch_tile == B or batch_tile % _SUBLANE == 0

    if loss_type == "DecisionNCE-T":
        kernel = functools.partial(_reward_t_kernel, F=F, D=D,
                                   logit_scale=float(logit_scale),
                                   mxu_dtype=mxu_dtype, approx_recip=approx_recip)
    else:
        kernel = functools.partial(_reward_p_kernel, F=F, D=D,
                                   logit_scale=float(logit_scale),
                                   mxu_dtype=mxu_dtype)

    # Stage 1: (B, B_pad) reward matrix, batch-tiled, pipelined, megacore-parallel.
    # TODO(synk): for very large B and/or D add a second grid axis over text
    # column tiles (caching the frame-collapsed accumulator in VMEM scratch at
    # j == 0) so the resident text block stays within v7x's 64 MiB/TC VMEM.
    reward = pl.pallas_call(
        kernel,
        out_shape=jax.ShapeDtypeStruct((B, B_pad), jnp.float32),
        grid_spec=pltpu.PrefetchScalarGridSpec(
            num_scalar_prefetch=0,
            grid=(B // batch_tile,),
            in_specs=[
                pl.BlockSpec((batch_tile, F * D), lambda i: (i, 0)),
                pl.BlockSpec((B_pad, D), lambda i: (0, 0)),   # text stays resident
            ],
            out_specs=pl.BlockSpec((batch_tile, B_pad), lambda i: (i, 0)),
        ),
        compiler_params=pltpu.CompilerParams(
            dimension_semantics=("parallel",),
            vmem_limit_bytes=_VMEM_LIMIT_BYTES),
    )(vis, tn)

    # Stage 2: symmetric cross entropy, row-tiled with online column logsumexp.
    row_tile = _pick_row_tile(B, B_pad)
    loss = pl.pallas_call(
        functools.partial(_sym_ce_kernel, n_valid=B),
        out_shape=jax.ShapeDtypeStruct((1, 1), jnp.float32),
        grid_spec=pltpu.PrefetchScalarGridSpec(
            num_scalar_prefetch=0,
            grid=(B // row_tile,),
            in_specs=[pl.BlockSpec((row_tile, B_pad), lambda i: (i, 0))],
            out_specs=pl.BlockSpec((1, 1), lambda i: (0, 0)),
            scratch_shapes=[
                pltpu.VMEM((1, B_pad), jnp.float32),   # running column max
                pltpu.VMEM((1, B_pad), jnp.float32),   # running column sum-exp
                pltpu.VMEM((1, 1), jnp.float32),       # sum of row logsumexps
                pltpu.VMEM((1, 1), jnp.float32),       # sum of diagonal logits
            ],
        ),
        compiler_params=pltpu.CompilerParams(
            dimension_semantics=("arbitrary",),
            vmem_limit_bytes=_VMEM_LIMIT_BYTES),
    )(reward)
    return loss[0, 0]


# --------------------------------------------------------------------------
# Pure-JAX reference (mirrors the PyTorch forward) for the in-script check
# --------------------------------------------------------------------------
def _ref_loss(v, t, logit_scale, loss_type):
    p_e_s = jnp.transpose(v, (1, 0, 2))  # (F, B, D)
    tn = t / jnp.linalg.norm(t, axis=-1, keepdims=True)
    if loss_type == "DecisionNCE-T":
        diff = p_e_s[1:] - p_e_s[:-1]
        diff = diff / (jnp.linalg.norm(diff, axis=-1, keepdims=True) + 1e-6)
        fl = jnp.einsum("fbd,jd->fbj", diff, tn) * logit_scale
        reward = jnp.sum(fl, axis=0)
    else:
        vn = p_e_s / jnp.linalg.norm(p_e_s, axis=-1, keepdims=True)
        fl = jnp.einsum("fbd,jd->fbj", vn, tn)
        Fn = fl.shape[0]
        reward = jnp.sum(fl[Fn // 2:] - fl[: Fn // 2], axis=0) * logit_scale
    B = reward.shape[0]
    idx = jnp.arange(B)

    def ce(logits):
        lse = jax.scipy.special.logsumexp(logits, axis=1)
        return jnp.mean(lse - logits[idx, idx])

    return (ce(reward) + ce(reward.T)) / 2


if __name__ == "__main__":
    # Small deterministic inputs: batch=16, frames=8 (even, as required by the
    # P-variant chunking), embed_dim=128.  batch_tile=8 exercises the 2-step
    # pipelined grid on the exact path; defaults exercise the bf16 fast path.
    B, F, D = 16, 8, 128
    key = jax.random.PRNGKey(0)
    kv, kt = jax.random.split(key)
    visual = jax.random.normal(kv, (B, F, D), dtype=jnp.float32)
    text = jax.random.normal(kt, (B, D), dtype=jnp.float32)

    ok = True
    for loss_type in ("DecisionNCE-T", "DecisionNCE-P"):
        # Exact-math path (f32 end-to-end) against the f32 reference.
        loss_exact = decision_nce_loss(
            visual, text, logit_scale=100.0, loss_type=loss_type,
            batch_tile=8, input_dtype=jnp.float32, mxu_dtype=jnp.float32,
            approx_recip=False)
        loss_exact = jax.block_until_ready(loss_exact)
        ref = _ref_loss(visual, text, 100.0, loss_type)
        if not jnp.allclose(loss_exact, ref, atol=1e-3, rtol=1e-3):
            ok = False
            print(f"MISMATCH exact {loss_type}: kernel={float(loss_exact)} "
                  f"ref={float(ref)}")

        # Production defaults (bf16 HBM inputs, bf16 MXU, EUP reciprocal),
        # compared against the reference on bf16-rounded inputs.
        loss_fast = decision_nce_loss(visual, text, logit_scale=100.0,
                                      loss_type=loss_type)
        loss_fast = jax.block_until_ready(loss_fast)
        v16 = visual.astype(jnp.bfloat16).astype(jnp.float32)
        t16 = text.astype(jnp.bfloat16).astype(jnp.float32)
        ref_fast = _ref_loss(v16, t16, 100.0, loss_type)
        if not jnp.allclose(loss_fast, ref_fast, atol=0.25, rtol=2e-2):
            ok = False
            print(f"MISMATCH fast {loss_type}: kernel={float(loss_fast)} "
                  f"ref={float(ref_fast)}")

    if ok:
        print("KERNEL_OK")
</pallas_src>

<mosaic_0001>
module attributes {stable_mosaic.version = 11 : i64} {
  func.func @_reward_t_kernel(%arg0: i32, %arg1: memref<8x1024xf32, #tpu.memory_space<vmem>>, %arg2: memref<128x128xf32, #tpu.memory_space<vmem>>, %arg3: memref<8x128xf32, #tpu.memory_space<vmem>>) attributes {dimension_semantics = [#tpu.dimension_semantics<parallel>], iteration_bounds = array<i64: 2>, scalar_prefetch = 0 : i64, scratch_operands = 0 : i64, tpu.core_type = #tpu.core_type<tc>, window_params = [{transform_indices = @transform_0, window_bounds = array<i64: 8, 1024>}, {pipeline_mode = #tpu.pipeline_mode<synchronous>, transform_indices = @transform_1, window_bounds = array<i64: 128, 128>}, {transform_indices = @transform_2, window_bounds = array<i64: 8, 128>}]} {
    %c0 = arith.constant 0 : index
    %c0_0 = arith.constant 0 : index
    %0 = vector.load %arg2[%c0, %c0_0] : memref<128x128xf32, #tpu.memory_space<vmem>>, vector<128x128xf32>
    %c0_1 = arith.constant 0 : index
    %c0_2 = arith.constant 0 : index
    %1 = vector.load %arg1[%c0_1, %c0_2] : memref<8x1024xf32, #tpu.memory_space<vmem>>, vector<8x128xf32>
    %cst = arith.constant 0.000000e+00 : f32
    %2 = vector.broadcast %cst : f32 to vector<8x128xf32>
    %c0_3 = arith.constant 0 : index
    %c128 = arith.constant 128 : index
    %3 = vector.load %arg1[%c0_3, %c128] : memref<8x1024xf32, #tpu.memory_space<vmem>>, vector<8x128xf32>
    %4 = arith.subf %3, %1 : vector<8x128xf32>
    %5 = arith.mulf %4, %4 : vector<8x128xf32>
    %cst_4 = arith.constant dense<0.000000e+00> : vector<8xf32>
    %6 = vector.multi_reduction <add>, %5, %cst_4 [1] : vector<8x128xf32> to vector<8xf32>
    %7 = vector.shape_cast %6 : vector<8xf32> to vector<8x1xf32>
    %8 = math.sqrt %7 : vector<8x1xf32>
    %cst_5 = arith.constant 9.99999997E-7 : f32
    %9 = vector.broadcast %cst_5 : f32 to vector<8x1xf32>
    %10 = arith.addf %8, %9 : vector<8x1xf32>
    %11 = tpu.reciprocal %10 : vector<8x1xf32> -> vector<8x1xf32>
    %12 = vector.broadcast %11 : vector<8x1xf32> to vector<8x128xf32>
    %13 = arith.mulf %4, %12 : vector<8x128xf32>
    %14 = arith.addf %2, %13 : vector<8x128xf32>
    %c0_6 = arith.constant 0 : index
    %c256 = arith.constant 256 : index
    %15 = vector.load %arg1[%c0_6, %c256] : memref<8x1024xf32, #tpu.memory_space<vmem>>, vector<8x128xf32>
    %16 = arith.subf %15, %3 : vector<8x128xf32>
    %17 = arith.mulf %16, %16 : vector<8x128xf32>
    %cst_7 = arith.constant dense<0.000000e+00> : vector<8xf32>
    %18 = vector.multi_reduction <add>, %17, %cst_7 [1] : vector<8x128xf32> to vector<8xf32>
    %19 = vector.shape_cast %18 : vector<8xf32> to vector<8x1xf32>
    %20 = math.sqrt %19 : vector<8x1xf32>
    %cst_8 = arith.constant 9.99999997E-7 : f32
    %21 = vector.broadcast %cst_8 : f32 to vector<8x1xf32>
    %22 = arith.addf %20, %21 : vector<8x1xf32>
    %23 = tpu.reciprocal %22 : vector<8x1xf32> -> vector<8x1xf32>
    %24 = vector.broadcast %23 : vector<8x1xf32> to vector<8x128xf32>
    %25 = arith.mulf %16, %24 : vector<8x128xf32>
    %26 = arith.addf %14, %25 : vector<8x128xf32>
    %c0_9 = arith.constant 0 : index
    %c384 = arith.constant 384 : index
    %27 = vector.load %arg1[%c0_9, %c384] : memref<8x1024xf32, #tpu.memory_space<vmem>>, vector<8x128xf32>
    %28 = arith.subf %27, %15 : vector<8x128xf32>
    %29 = arith.mulf %28, %28 : vector<8x128xf32>
    %cst_10 = arith.constant dense<0.000000e+00> : vector<8xf32>
    %30 = vector.multi_reduction <add>, %29, %cst_10 [1] : vector<8x128xf32> to vector<8xf32>
    %31 = vector.shape_cast %30 : vector<8xf32> to vector<8x1xf32>
    %32 = math.sqrt %31 : vector<8x1xf32>
    %cst_11 = arith.constant 9.99999997E-7 : f32
    %33 = vector.broadcast %cst_11 : f32 to vector<8x1xf32>
    %34 = arith.addf %32, %33 : vector<8x1xf32>
    %35 = tpu.reciprocal %34 : vector<8x1xf32> -> vector<8x1xf32>
    %36 = vector.broadcast %35 : vector<8x1xf32> to vector<8x128xf32>
    %37 = arith.mulf %28, %36 : vector<8x128xf32>
    %38 = arith.addf %26, %37 : vector<8x128xf32>
    %c0_12 = arith.constant 0 : index
    %c512 = arith.constant 512 : index
    %39 = vector.load %arg1[%c0_12, %c512] : memref<8x1024xf32, #tpu.memory_space<vmem>>, vector<8x128xf32>
    %40 = arith.subf %39, %27 : vector<8x128xf32>
    %41 = arith.mulf %40, %40 : vector<8x128xf32>
    %cst_13 = arith.constant dense<0.000000e+00> : vector<8xf32>
    %42 = vector.multi_reduction <add>, %41, %cst_13 [1] : vector<8x128xf32> to vector<8xf32>
    %43 = vector.shape_cast %42 : vector<8xf32> to vector<8x1xf32>
    %44 = math.sqrt %43 : vector<8x1xf32>
    %cst_14 = arith.constant 9.99999997E-7 : f32
    %45 = vector.broadcast %cst_14 : f32 to vector<8x1xf32>
    %46 = arith.addf %44, %45 : vector<8x1xf32>
    %47 = tpu.reciprocal %46 : vector<8x1xf32> -> vector<8x1xf32>
    %48 = vector.broadcast %47 : vector<8x1xf32> to vector<8x128xf32>
    %49 = arith.mulf %40, %48 : vector<8x128xf32>
    %50 = arith.addf %38, %49 : vector<8x128xf32>
    %c0_15 = arith.constant 0 : index
    %c640 = arith.constant 640 : index
    %51 = vector.load %arg1[%c0_15, %c640] : memref<8x1024xf32, #tpu.memory_space<vmem>>, vector<8x128xf32>
    %52 = arith.subf %51, %39 : vector<8x128xf32>
    %53 = arith.mulf %52, %52 : vector<8x128xf32>
    %cst_16 = arith.constant dense<0.000000e+00> : vector<8xf32>
    %54 = vector.multi_reduction <add>, %53, %cst_16 [1] : vector<8x128xf32> to vector<8xf32>
    %55 = vector.shape_cast %54 : vector<8xf32> to vector<8x1xf32>
    %56 = math.sqrt %55 : vector<8x1xf32>
    %cst_17 = arith.constant 9.99999997E-7 : f32
    %57 = vector.broadcast %cst_17 : f32 to vector<8x1xf32>
    %58 = arith.addf %56, %57 : vector<8x1xf32>
    %59 = tpu.reciprocal %58 : vector<8x1xf32> -> vector<8x1xf32>
    %60 = vector.broadcast %59 : vector<8x1xf32> to vector<8x128xf32>
    %61 = arith.mulf %52, %60 : vector<8x128xf32>
    %62 = arith.addf %50, %61 : vector<8x128xf32>
    %c0_18 = arith.constant 0 : index
    %c768 = arith.constant 768 : index
    %63 = vector.load %arg1[%c0_18, %c768] : memref<8x1024xf32, #tpu.memory_space<vmem>>, vector<8x128xf32>
    %64 = arith.subf %63, %51 : vector<8x128xf32>
    %65 = arith.mulf %64, %64 : vector<8x128xf32>
    %cst_19 = arith.constant dense<0.000000e+00> : vector<8xf32>
    %66 = vector.multi_reduction <add>, %65, %cst_19 [1] : vector<8x128xf32> to vector<8xf32>
    %67 = vector.shape_cast %66 : vector<8xf32> to vector<8x1xf32>
    %68 = math.sqrt %67 : vector<8x1xf32>
    %cst_20 = arith.constant 9.99999997E-7 : f32
    %69 = vector.broadcast %cst_20 : f32 to vector<8x1xf32>
    %70 = arith.addf %68, %69 : vector<8x1xf32>
    %71 = tpu.reciprocal %70 : vector<8x1xf32> -> vector<8x1xf32>
    %72 = vector.broadcast %71 : vector<8x1xf32> to vector<8x128xf32>
    %73 = arith.mulf %64, %72 : vector<8x128xf32>
    %74 = arith.addf %62, %73 : vector<8x128xf32>
    %c0_21 = arith.constant 0 : index
    %c896 = arith.constant 896 : index
    %75 = vector.load %arg1[%c0_21, %c896] : memref<8x1024xf32, #tpu.memory_space<vmem>>, vector<8x128xf32>
    %76 = arith.subf %75, %63 : vector<8x128xf32>
    %77 = arith.mulf %76, %76 : vector<8x128xf32>
    %cst_22 = arith.constant dense<0.000000e+00> : vector<8xf32>
    %78 = vector.multi_reduction <add>, %77, %cst_22 [1] : vector<8x128xf32> to vector<8xf32>
    %79 = vector.shape_cast %78 : vector<8xf32> to vector<8x1xf32>
    %80 = math.sqrt %79 : vector<8x1xf32>
    %cst_23 = arith.constant 9.99999997E-7 : f32
    %81 = vector.broadcast %cst_23 : f32 to vector<8x1xf32>
    %82 = arith.addf %80, %81 : vector<8x1xf32>
    %83 = tpu.reciprocal %82 : vector<8x1xf32> -> vector<8x1xf32>
    %84 = vector.broadcast %83 : vector<8x1xf32> to vector<8x128xf32>
    %85 = arith.mulf %76, %84 : vector<8x128xf32>
    %86 = arith.addf %74, %85 : vector<8x128xf32>
    %cst_24 = arith.constant dense<0.000000e+00> : vector<8x128xf32>
    %87 = tpu.matmul %86, %0, %cst_24 {dimension_numbers = #tpu.dot_dimension_numbers<[1], [1], [0], [0], [0, 0, 1, 0], [], []>} : vector<8x128xf32>, vector<128x128xf32>, vector<8x128xf32> -> vector<8x128xf32>
    %cst_25 = arith.constant 1.000000e+02 : f32
    %88 = vector.broadcast %cst_25 : f32 to vector<8x128xf32>
    %89 = arith.mulf %87, %88 : vector<8x128xf32>
    %c0_26 = arith.constant 0 : index
    %c0_27 = arith.constant 0 : index
    %90 = vector.load %arg3[%c0_26, %c0_27] : memref<8x128xf32, #tpu.memory_space<vmem>>, vector<8x128xf32>
    tpu.vector_store %arg3[%c0_26, %c0_27], %89 {strides = array<i32>} : memref<8x128xf32, #tpu.memory_space<vmem>>, vector<8x128xf32>,
    return
  }
  func.func @transform_0(%arg0: i32) -> (i32, i32) {
    %c0_i32 = arith.constant 0 : i32
    %c0_i32_0 = arith.constant 0 : i32
    return %arg0, %c0_i32 : i32, i32
  }
  func.func @transform_1(%arg0: i32) -> (i32, i32) {
    %c0_i32 = arith.constant 0 : i32
    %c0_i32_0 = arith.constant 0 : i32
    %c0_i32_1 = arith.constant 0 : i32
    return %c0_i32, %c0_i32_0 : i32, i32
  }
  func.func @transform_2(%arg0: i32) -> (i32, i32) {
    %c0_i32 = arith.constant 0 : i32
    %c0_i32_0 = arith.constant 0 : i32
    return %arg0, %c0_i32 : i32, i32
  }
}

</mosaic_0001>

<llo_original>
// kernel: tpu_custom_call.1
$region0: #{tpu_custom_call.1}
  #allocation0 [shape = 'u32[]', space=smem, size = 0x4, offset = 0x4, fixed_abs, tag = 'smem constant byte address 0x4 - core index']
  #allocation1 [shape = 'u32[72,128]{1,0:T(1,128)}', space=vmem, size = 0x9000, scoped, tag = 'internal scratch']
  %s0 = inlined_call_operand.hbm [shape: f32[16,1024], index: 0, kind: input, shape index: {}]
  %s1 = inlined_call_operand.hbm [shape: f32[128,128], index: 1, kind: input, shape index: {}]
  %s2 = inlined_call_operand.hbm [shape: f32[16,128], index: 2, kind: output, shape index: {}]
  %s3 = sld [smem:[#allocation0]]
  $region49: #{tpu_custom_call.1} parent=0
    _
  %s5 = ssub.s32 1, %s3
  %s6 = scalar_select 0, %s5, %s3
  $region1: #{tpu_custom_call.1} parent=0
    #allocation2 [shape = 'u8[65536]{0}', space=vmem, size = 0x10000, scoped, tag = 'input window, operand 0']
    #allocation3 [shape = 's32[2]{0}', space=sflag, size = 0x8, scoped, tag = 'scoped memory for tpu_custom_call.1']
    #allocation4 [shape = 's32[2]{0}', space=sflag, size = 0x8, scoped, tag = 'scoped memory for tpu_custom_call.1']
    #allocation5 [shape = 'u8[65536]{0}', space=vmem, size = 0x10000, scoped, tag = 'input window, operand 1, single buffered']
    #allocation6 [shape = 's32[1]{0}', space=sflag, size = 0x4, scoped, tag = 'scoped memory for tpu_custom_call.1']
    #allocation7 [shape = 'u8[8192]{0}', space=vmem, size = 0x2000, scoped, tag = 'output window, operand 0']
    %7 = vsyncpa [#allocation3], 0
    %s8 = scalar_lea.sflag [#allocation3], 1
    %9 = vsyncpa %s8, 0
    %10 = vsyncpa [#allocation6], 0
    %11 = vsyncpa [#allocation4], 0
    %s12 = scalar_lea.sflag [#allocation4], 1
    %13 = vsyncpa %s12, 0
    loop: start=0, step=1, limit=4
    $region2: #{tpu_custom_call.1} parent=1 // loop_pre_header
      _
    $region3: #{tpu_custom_call.1} parent=1 // loop_header
      %s15 = sphi 0, %s19
      %p16 = scmp.ge.s32.totalorder %s15, 4
      %s25 = sphi 0, %s27
      %s28 = sphi 0, %s25
      %s29 = sphi 0, %s28
      %s45 = sphi 0, %s29
      %s49 = sphi 0, %s49
      %s51 = sphi 0, %s49
      %s52 = sphi 0, %s51
      %s66 = sphi 0, %s52
      %s72 = sphi 0, %s74
      %s75 = sphi 0, %s72
      %s76 = sphi 0, %s75
      %s92 = sphi 0, %s76
    $region4: #{tpu_custom_call.1} parent=1 // loop_header_branch
      %18 = sbr.rel (%p16) target = $region8
    $region5: #{tpu_custom_call.1} parent=1 // loop_body
      %s20 = ssub.s32 %s15, 1
      %s21 = ssub.s32 %s15, 2
      %s22 = sadd.s32 %s15, 1
      %s23 = ssub.s32 %s15, %s22
      %p24 = scmp.eq.s32.totalorder %s23, 0
      %s26 = sadd.s32 %s25, 1
      %s27 = scalar_select %p24, %s25, %s26
      %p30 = pneg %p24
      %p31 = scmp.eq.s32.totalorder %s15, 1
      %p32 = por %p30, %p31
      %p33 = scmp.ne.s32.totalorder %s25, %s28
      %p34 = scmp.eq.s32.totalorder %s15, 0
      %p35 = por %p33, %p34
      %p36 = scmp.ne.s32.totalorder %s25, %s28
      %p37 = scmp.eq.s32.totalorder %s20, 1
      %p38 = por %p36, %p37
      %p39 = scmp.ne.s32.totalorder %s28, %s29
      %p40 = scmp.eq.s32.totalorder %s20, 0
      %p41 = por %p39, %p40
      %p42 = scmp.ne.s32.totalorder %s28, %s29
      %p43 = scmp.eq.s32.totalorder %s21, 1
      %p44 = por %p42, %p43
      %p46 = scmp.ne.s32.totalorder %s29, %s45
      %p47 = scmp.eq.s32.totalorder %s21, 0
      %p48 = por %p46, %p47
      %s50 = sadd.s32 %s49, 1
      %p53 = scmp.eq.s32.totalorder %s15, 1
      %p54 = scmp.ne.s32.totalorder %s49, %s51
      %p55 = scmp.eq.s32.totalorder %s15, 0
      %p56 = por %p54, %p55
      %p57 = scmp.ne.s32.totalorder %s49, %s51
      %p58 = scmp.eq.s32.totalorder %s20, 1
      %p59 = por %p57, %p58
      %p60 = scmp.ne.s32.totalorder %s51, %s52
      %p61 = scmp.eq.s32.totalorder %s20, 0
      %p62 = por %p60, %p61
      %p63 = scmp.ne.s32.totalorder %s51, %s52
      %p64 = scmp.eq.s32.totalorder %s21, 1
      %p65 = por %p63, %p64
      %p67 = scmp.ne.s32.totalorder %s52, %s66
      %p68 = scmp.eq.s32.totalorder %s21, 0
      %p69 = por %p67, %p68
      %s70 = ssub.s32 %s15, %s22
      %p71 = scmp.eq.s32.totalorder %s70, 0
      %s73 = sadd.s32 %s72, 1
      %s74 = scalar_select %p71, %s72, %s73
      %p77 = pneg %p71
      %p78 = scmp.eq.s32.totalorder %s15, 1
      %p79 = por %p77, %p78
      %p80 = scmp.ne.s32.totalorder %s72, %s75
      %p81 = scmp.eq.s32.totalorder %s15, 0
      %p82 = por %p80, %p81
      %p83 = scmp.ne.s32.totalorder %s72, %s75
      %p84 = scmp.eq.s32.totalorder %s20, 1
      %p85 = por %p83, %p84
      %p86 = scmp.ne.s32.totalorder %s75, %s76
      %p87 = scmp.eq.s32.totalorder %s20, 0
      %p88 = por %p86, %p87
      %p89 = scmp.ne.s32.totalorder %s75, %s76
      %p90 = scmp.eq.s32.totalorder %s21, 1
      %p91 = por %p89, %p90
      %p93 = scmp.ne.s32.totalorder %s76, %s92
      %p94 = scmp.eq.s32.totalorder %s21, 0
      %p95 = por %p93, %p94
      %p96 = scmp.le.s32.totalorder 1, %s15
      %p97 = scmp.lt.s32.totalorder %s15, 3
      %p98 = pnand %p96, %p97
      %p99 = pneg %p98
      // Predicated region
      $region9: #{tpu_custom_call.1} parent=5 // pred_check
        _
      $region10: #{tpu_custom_call.1} parent=5 // pred_check_branch
        %101 = sbr.rel (%p98) target = $region12
      $region11: #{tpu_custom_call.1} parent=5 // pred_region
        %s102 = ssub.s32 %s15, 1
        // Predicated region
        $region13: #{tpu_custom_call.1} parent=11 // pred_check
          %p103 = pneg %p62
        $region14: #{tpu_custom_call.1} parent=11 // pred_check_branch
          %105 = sbr.rel (%p103) target = $region16
        $region15: #{tpu_custom_call.1} parent=11 // pred_region
          %107 = vsyncadd [#allocation6], 0
          %s108 = sshll.u32 %s1, 4
          %s109 = int_to_ptr.hbm [resolvable:$true] %s108
          %s110 = sshll.u32 [#allocation5], 4
          %s111 = int_to_ptr.vmem [resolvable:$true] %s110
          %116 = dma.hbm_to_vmem [thread:$0]  %s109, 2048, %s111, [#allocation6], 128, 128, 8
        $region16: #{tpu_custom_call.1} parent=11 // pred_fallthru
          _
      $region12: #{tpu_custom_call.1} parent=5 // pred_fallthru
        _
      %p117 = scmp.lt.s32.totalorder %s15, 2
      // Predicated region
      $region17: #{tpu_custom_call.1} parent=5 // pred_check
        %p118 = pneg %p117
      $region18: #{tpu_custom_call.1} parent=5 // pred_check_branch
        %120 = sbr.rel (%p118) target = $region20
      $region19: #{tpu_custom_call.1} parent=5 // pred_region
        // Predicated region
        $region21: #{tpu_custom_call.1} parent=19 // pred_check
          %p121 = pneg %p35
        $region22: #{tpu_custom_call.1} parent=19 // pred_check_branch
          %123 = sbr.rel (%p121) target = $region24
        $region23: #{tpu_custom_call.1} parent=19 // pred_region
          %s124 = sand.u32 %s25, 1
          %s125 = scalar_lea.sflag [#allocation3], %s124
          %s126 = sand.u32 %s25, 1
          %s127 = smul.addr %s126, 64
          %s128 = scalar_lea.vmem [#allocation2], %s127
          %130 = vsyncadd %s125, 0
          %s131 = smul.addr %s15, 8
          %s132 = smul.addr %s131, 8
          %s133 = scalar_lea.hbm %s0, %s132
          %s135 = sshll.u32 %s133, 4
          %s136 = int_to_ptr.hbm [resolvable:$true] %s135
          %s137 = sshll.u32 %s128, 4
          %s138 = int_to_ptr.vmem [resolvable:$true] %s137
          %140 = dma.hbm_to_vmem [thread:$0]  %s136, 1024, %s138, %s125
        $region24: #{tpu_custom_call.1} parent=19 // pred_fallthru
          _
      $region20: #{tpu_custom_call.1} parent=5 // pred_fallthru
        _
      %p141 = scmp.le.s32.totalorder 1, %s15
      %p142 = scmp.lt.s32.totalorder %s15, 3
      %p143 = pnand %p141, %p142
      %p144 = pneg %p143
      // Predicated region
      $region25: #{tpu_custom_call.1} parent=5 // pred_check
        _
      $region26: #{tpu_custom_call.1} parent=5 // pred_check_branch
        %146 = sbr.rel (%p143) target = $region28
      $region27: #{tpu_custom_call.1} parent=5 // pred_region
        %s147 = ssub.s32 %s15, 1
        %s148 = sand.u32 %s28, 1
        %s149 = scalar_lea.sflag [#allocation3], %s148
        %s150 = sand.u32 %s28, 1
        %s151 = smul.addr %s150, 64
        %s152 = scalar_lea.vmem [#allocation2], %s151
        // Predicated region
        $region29: #{tpu_custom_call.1} parent=27 // pred_check
          %p153 = pneg %p41
        $region30: #{tpu_custom_call.1} parent=27 // pred_check_branch
          %155 = sbr.rel (%p153) target = $region32
        $region31: #{tpu_custom_call.1} parent=27 // pred_region
          %157 = dma.done %s149, 1024
        $region32: #{tpu_custom_call.1} parent=27 // pred_fallthru
          _
        // Predicated region
        $region33: #{tpu_custom_call.1} parent=27 // pred_check
          %p158 = pneg %p62
        $region34: #{tpu_custom_call.1} parent=27 // pred_check_branch
          %160 = sbr.rel (%p158) target = $region36
        $region35: #{tpu_custom_call.1} parent=27 // pred_region
          %162 = dma.done [#allocation6], 2048
        $region36: #{tpu_custom_call.1} parent=27 // pred_fallthru
          _
        %s163 = sand.u32 %s28, 1
        %s164 = scalar_lea.sflag [#allocation3], %s163
        %s165 = sand.u32 %s28, 1
        %s166 = smul.addr %s165, 64
        %s167 = scalar_lea.vmem [#allocation2], %s166
        %p168 = pneg %p41
        %p169 = pneg %p38
        %p170 = pneg %p62
        %p171 = pneg %p59
        %p172 = pneg %p88
        %p173 = pneg %p85
        %s174 = sand.u32 %s75, 1
        %s175 = scalar_lea.sflag [#allocation4], %s174
        %s176 = sand.u32 %s75, 1
        %s177 = smul.addr %s176, 8
        %s178 = scalar_lea.vmem [#allocation7], %s177
        %v179 = vld [vmem:[#allocation5] sm:$0xff]
        %v180 = vld [vmem:[#allocation5 + $0x8] sm:$0xff]
        %v181 = vld [vmem:[#allocation5 + $0x10] sm:$0xff]
        %v182 = vld [vmem:[#allocation5 + $0x18] sm:$0xff]
        %v183 = vld [vmem:[#allocation5 + $0x20] sm:$0xff]
        %v184 = vld [vmem:[#allocation5 + $0x28] sm:$0xff]
        %v185 = vld [vmem:[#allocation5 + $0x30] sm:$0xff]
        %v186 = vld [vmem:[#allocation5 + $0x38] sm:$0xff]
        %v187 = vld [vmem:[#allocation5 + $0x40] sm:$0xff]
        %v188 = vld [vmem:[#allocation5 + $0x48] sm:$0xff]
        %v189 = vld [vmem:[#allocation5 + $0x50] sm:$0xff]
        %v190 = vld [vmem:[#allocation5 + $0x58] sm:$0xff]
        %v191 = vld [vmem:[#allocation5 + $0x60] sm:$0xff]
        %v192 = vld [vmem:[#allocation5 + $0x68] sm:$0xff]
        %v193 = vld [vmem:[#allocation5 + $0x70] sm:$0xff]
        %v194 = vld [vmem:[#allocation5 + $0x78] sm:$0xff]
        %v195 = vld [vmem:[%s152] sm:$0xff]
        %v196 = vld [vmem:[%s152 + $0x8] sm:$0xff]
        %v197 = vsub.f32 %v196, %v195
        %v198 = vmul.f32 %v197, %v197
        %199 = vadd.xlane.f32.xlu0 %v198
        %v200 = vpop.xlane.xlu0 %199
        %v201 = vrsqrt.pop %v200
        %v202 = vmul.f32 %v201, %v200
        %v203 = vmul.f32 %v202, %v201
        %v204 = vmul.f32 0.5, %v203
        %v205 = vsub.f32 1.5, %v204
        %v206 = vmul.f32 %v201, %v205
        %v207 = vmul.f32 %v200, %v206
        %vm208 = vcmp.eq.f32.partialorder %v200, inf
        %v209 = vsel %vm208, %v200, %v207
        %vm210 = vcmp.eq.f32.partialorder %v200, 0.0
        %v211 = vand.u32 %v200, 2147483648
        %v212 = vsel %vm210, %v211, %v209
        %v213 = vadd.f32 %v212, 1e-06
        %v214 = vrcp.pop %v213
        %v215 = vmul.f32 %v213, %v214
        %v216 = vsub.f32 1.0, %v215
        %v217 = vmul.f32 %v214, %v216
        %v218 = vadd.f32 %v214, %v217
        %vm219 = vweird.f32 %v213
        %vm220 = vweird.f32 %v214
        %vm221 = vmor %vm219, %vm220
        %v222 = vsel %vm221, %v214, %v218
        %v223 = vand.u32 2147483647, %v213
        %vm224 = vcmp.eq.f32.partialorder %v223, 8.507059e+37
        %v225 = vand.u32 %v213, 2147483648
        %v226 = vor.u32 1.1754944e-38, %v225
        %v227 = vsel %vm224, %v226, %v222
        %v228 = vmul.f32 %v197, %v227
        %v229 = vadd.f32 %v228, 0.0
        %v230 = vld [vmem:[%s152 + $0x10] sm:$0xff]
        %v231 = vsub.f32 %v230, %v196
        %v232 = vmul.f32 %v231, %v231
        %233 = vadd.xlane.f32.xlu0 %v232
        %v234 = vpop.xlane.xlu0 %233
        %v235 = vrsqrt.pop %v234
        %v236 = vmul.f32 %v235, %v234
        %v237 = vmul.f32 %v236, %v235
        %v238 = vmul.f32 0.5, %v237
        %v239 = vsub.f32 1.5, %v238
        %v240 = vmul.f32 %v235, %v239
        %v241 = vmul.f32 %v234, %v240
        %vm242 = vcmp.eq.f32.partialorder %v234, inf
        %v243 = vsel %vm242, %v234, %v241
        %vm244 = vcmp.eq.f32.partialorder %v234, 0.0
        %v245 = vand.u32 %v234, 2147483648
        %v246 = vsel %vm244, %v245, %v243
        %v247 = vadd.f32 %v246, 1e-06
        %v248 = vrcp.pop %v247
        %v249 = vmul.f32 %v247, %v248
        %v250 = vsub.f32 1.0, %v249
        %v251 = vmul.f32 %v248, %v250
        %v252 = vadd.f32 %v248, %v251
        %vm253 = vweird.f32 %v247
        %vm254 = vweird.f32 %v248
        %vm255 = vmor %vm253, %vm254
        %v256 = vsel %vm255, %v248, %v252
        %v257 = vand.u32 2147483647, %v247
        %vm258 = vcmp.eq.f32.partialorder %v257, 8.507059e+37
        %v259 = vand.u32 %v247, 2147483648
        %v260 = vor.u32 1.1754944e-38, %v259
        %v261 = vsel %vm258, %v260, %v256
        %v262 = vmul.f32 %v231, %v261
        %v263 = vadd.f32 %v229, %v262
        %v264 = vld [vmem:[%s152 + $0x18] sm:$0xff]
        %v265 = vsub.f32 %v264, %v230
        %v266 = vmul.f32 %v265, %v265
        %267 = vadd.xlane.f32.xlu0 %v266
        %v268 = vpop.xlane.xlu0 %267
        %v269 = vrsqrt.pop %v268
        %v270 = vmul.f32 %v269, %v268
        %v271 = vmul.f32 %v270, %v269
        %v272 = vmul.f32 0.5, %v271
        %v273 = vsub.f32 1.5, %v272
        %v274 = vmul.f32 %v269, %v273
        %v275 = vmul.f32 %v268, %v274
        %vm276 = vcmp.eq.f32.partialorder %v268, inf
        %v277 = vsel %vm276, %v268, %v275
        %vm278 = vcmp.eq.f32.partialorder %v268, 0.0
        %v279 = vand.u32 %v268, 2147483648
        %v280 = vsel %vm278, %v279, %v277
        %v281 = vadd.f32 %v280, 1e-06
        %v282 = vrcp.pop %v281
        %v283 = vmul.f32 %v281, %v282
        %v284 = vsub.f32 1.0, %v283
        %v285 = vmul.f32 %v282, %v284
        %v286 = vadd.f32 %v282, %v285
        %vm287 = vweird.f32 %v281
        %vm288 = vweird.f32 %v282
        %vm289 = vmor %vm287, %vm288
        %v290 = vsel %vm289, %v282, %v286
        %v291 = vand.u32 2147483647, %v281
        %vm292 = vcmp.eq.f32.partialorder %v291, 8.507059e+37
        %v293 = vand.u32 %v281, 2147483648
        %v294 = vor.u32 1.1754944e-38, %v293
        %v295 = vsel %vm292, %v294, %v290
        %v296 = vmul.f32 %v265, %v295
        %v297 = vadd.f32 %v263, %v296
        %v298 = vld [vmem:[%s152 + $0x20] sm:$0xff]
        %v299 = vsub.f32 %v298, %v264
        %v300 = vmul.f32 %v299, %v299
        %301 = vadd.xlane.f32.xlu0 %v300
        %v302 = vpop.xlane.xlu0 %301
        %v303 = vrsqrt.pop %v302
        %v304 = vmul.f32 %v303, %v302
        %v305 = vmul.f32 %v304, %v303
        %v306 = vmul.f32 0.5, %v305
        %v307 = vsub.f32 1.5, %v306
        %v308 = vmul.f32 %v303, %v307
        %v309 = vmul.f32 %v302, %v308
        %vm310 = vcmp.eq.f32.partialorder %v302, inf
        %v311 = vsel %vm310, %v302, %v309
        %vm312 = vcmp.eq.f32.partialorder %v302, 0.0
        %v313 = vand.u32 %v302, 2147483648
        %v314 = vsel %vm312, %v313, %v311
        %v315 = vadd.f32 %v314, 1e-06
        %v316 = vrcp.pop %v315
        %v317 = vmul.f32 %v315, %v316
        %v318 = vsub.f32 1.0, %v317
        %v319 = vmul.f32 %v316, %v318
        %v320 = vadd.f32 %v316, %v319
        %vm321 = vweird.f32 %v315
        %vm322 = vweird.f32 %v316
        %vm323 = vmor %vm321, %vm322
        %v324 = vsel %vm323, %v316, %v320
        %v325 = vand.u32 2147483647, %v315
        %vm326 = vcmp.eq.f32.partialorder %v325, 8.507059e+37
        %v327 = vand.u32 %v315, 2147483648
        %v328 = vor.u32 1.1754944e-38, %v327
        %v329 = vsel %vm326, %v328, %v324
        %v330 = vmul.f32 %v299, %v329
        %v331 = vadd.f32 %v297, %v330
        %v332 = vld [vmem:[%s152 + $0x28] sm:$0xff]
        %v333 = vsub.f32 %v332, %v298
        %v334 = vmul.f32 %v333, %v333
        %335 = vadd.xlane.f32.xlu0 %v334
        %v336 = vpop.xlane.xlu0 %335
        %v337 = vrsqrt.pop %v336
        %v338 = vmul.f32 %v337, %v336
        %v339 = vmul.f32 %v338, %v337
        %v340 = vmul.f32 0.5, %v339
        %v341 = vsub.f32 1.5, %v340
        %v342 = vmul.f32 %v337, %v341
        %v343 = vmul.f32 %v336, %v342
        %vm344 = vcmp.eq.f32.partialorder %v336, inf
        %v345 = vsel %vm344, %v336, %v343
        %vm346 = vcmp.eq.f32.partialorder %v336, 0.0
        %v347 = vand.u32 %v336, 2147483648
        %v348 = vsel %vm346, %v347, %v345
        %v349 = vadd.f32 %v348, 1e-06
        %v350 = vrcp.pop %v349
        %v351 = vmul.f32 %v349, %v350
        %v352 = vsub.f32 1.0, %v351
        %v353 = vmul.f32 %v350, %v352
        %v354 = vadd.f32 %v350, %v353
        %vm355 = vweird.f32 %v349
        %vm356 = vweird.f32 %v350
        %vm357 = vmor %vm355, %vm356
        %v358 = vsel %vm357, %v350, %v354
        %v359 = vand.u32 2147483647, %v349
        %vm360 = vcmp.eq.f32.partialorder %v359, 8.507059e+37
        %v361 = vand.u32 %v349, 2147483648
        %v362 = vor.u32 1.1754944e-38, %v361
        %v363 = vsel %vm360, %v362, %v358
        %v364 = vmul.f32 %v333, %v363
        %v365 = vadd.f32 %v331, %v364
        %v366 = vld [vmem:[%s152 + $0x30] sm:$0xff]
        %v367 = vsub.f32 %v366, %v332
        %v368 = vmul.f32 %v367, %v367
        %369 = vadd.xlane.f32.xlu0 %v368
        %v370 = vpop.xlane.xlu0 %369
        %v371 = vrsqrt.pop %v370
        %v372 = vmul.f32 %v371, %v370
        %v373 = vmul.f32 %v372, %v371
        %v374 = vmul.f32 0.5, %v373
        %v375 = vsub.f32 1.5, %v374
        %v376 = vmul.f32 %v371, %v375
        %v377 = vmul.f32 %v370, %v376
        %vm378 = vcmp.eq.f32.partialorder %v370, inf
        %v379 = vsel %vm378, %v370, %v377
        %vm380 = vcmp.eq.f32.partialorder %v370, 0.0
        %v381 = vand.u32 %v370, 2147483648
        %v382 = vsel %vm380, %v381, %v379
        %v383 = vadd.f32 %v382, 1e-06
        %v384 = vrcp.pop %v383
        %v385 = vmul.f32 %v383, %v384
        %v386 = vsub.f32 1.0, %v385
        %v387 = vmul.f32 %v384, %v386
        %v388 = vadd.f32 %v384, %v387
        %vm389 = vweird.f32 %v383
        %vm390 = vweird.f32 %v384
        %vm391 = vmor %vm389, %vm390
        %v392 = vsel %vm391, %v384, %v388
        %v393 = vand.u32 2147483647, %v383
        %vm394 = vcmp.eq.f32.partialorder %v393, 8.507059e+37
        %v395 = vand.u32 %v383, 2147483648
        %v396 = vor.u32 1.1754944e-38, %v395
        %v397 = vsel %vm394, %v396, %v392
        %v398 = vmul.f32 %v367, %v397
        %v399 = vadd.f32 %v365, %v398
        %v400 = vld [vmem:[%s152 + $0x38] sm:$0xff]
        %v401 = vsub.f32 %v400, %v366
        %v402 = vmul.f32 %v401, %v401
        %403 = vadd.xlane.f32.xlu0 %v402
        %v404 = vpop.xlane.xlu0 %403
        %v405 = vrsqrt.pop %v404
        %v406 = vmul.f32 %v405, %v404
        %v407 = vmul.f32 %v406, %v405
        %v408 = vmul.f32 0.5, %v407
        %v409 = vsub.f32 1.5, %v408
        %v410 = vmul.f32 %v405, %v409
        %v411 = vmul.f32 %v404, %v410
        %vm412 = vcmp.eq.f32.partialorder %v404, inf
        %v413 = vsel %vm412, %v404, %v411
        %vm414 = vcmp.eq.f32.partialorder %v404, 0.0
        %v415 = vand.u32 %v404, 2147483648
        %v416 = vsel %vm414, %v415, %v413
        %v417 = vadd.f32 %v416, 1e-06
        %v418 = vrcp.pop %v417
        %v419 = vmul.f32 %v417, %v418
        %v420 = vsub.f32 1.0, %v419
        %v421 = vmul.f32 %v418, %v420
        %v422 = vadd.f32 %v418, %v421
        %vm423 = vweird.f32 %v417
        %vm424 = vweird.f32 %v418
        %vm425 = vmor %vm423, %vm424
        %v426 = vsel %vm425, %v418, %v422
        %v427 = vand.u32 2147483647, %v417
        %vm428 = vcmp.eq.f32.partialorder %v427, 8.507059e+37
        %v429 = vand.u32 %v417, 2147483648
        %v430 = vor.u32 1.1754944e-38, %v429
        %v431 = vsel %vm428, %v430, %v426
        %v432 = vmul.f32 %v401, %v431
        %v433 = vadd.f32 %v399, %v432
        %434 = vmatpush.xpose.msra.mxu0 %v194
        %435 = vmatpush.xpose.msra.mxu0 %v193
        %436 = vmatpush.xpose.msra.mxu0 %v192
        %437 = vmatpush.xpose.msra.mxu0 %v191
        %438 = vmatpush.xpose.msra.mxu0 %v190
        %439 = vmatpush.xpose.msra.mxu0 %v189
        %440 = vmatpush.xpose.msra.mxu0 %v188
        %441 = vmatpush.xpose.msra.mxu0 %v187
        %442 = vmatpush.xpose.msra.mxu0 %v186
        %443 = vmatpush.xpose.msra.mxu0 %v185
        %444 = vmatpush.xpose.msra.mxu0 %v184
        %445 = vmatpush.xpose.msra.mxu0 %v183
        %446 = vmatpush.xpose.msra.mxu0 %v182
        %447 = vmatpush.xpose.msra.mxu0 %v181
        %448 = vmatpush.xpose.msra.mxu0 %v180
        %449 = vmatpush.xpose.msra.mxu0 %v179
        %450 = vmatmul.f32.gmra.mxu0 %v433
        %v451 = vpop.f32.mrf.mxu0
        %v452 = vadd.f32 0.0, %v451
        %453 = vdwg.mxu0
        %v454 = vmul.f32 %v452, 100.0
        %455 = vst [vmem:[%s178] sm:$0xff] %v454
        %s456 = sand.u32 %s75, 1
        %s457 = scalar_lea.sflag [#allocation4], %s456
        %s458 = sand.u32 %s75, 1
        %s459 = smul.addr %s458, 8
        %s460 = scalar_lea.vmem [#allocation7], %s459
        // Predicated region
        $region37: #{tpu_custom_call.1} parent=27 // pred_check
          %p461 = pneg %p85
        $region38: #{tpu_custom_call.1} parent=27 // pred_check_branch
          %463 = sbr.rel (%p461) target = $region40
        $region39: #{tpu_custom_call.1} parent=27 // pred_region
          %465 = vsyncadd %s457, 0
          %s466 = smul.addr %s20, 8
          %s467 = scalar_lea.hbm %s2, %s466
          %s469 = sshll.u32 %s460, 4
          %s470 = int_to_ptr.vmem [resolvable:$true] %s469
          %s471 = sshll.u32 %s467, 4
          %s472 = int_to_ptr.hbm [resolvable:$true] %s471
          %474 = dma.vmem_to_hbm [thread:$0]  %s470, 128, %s472, %s457
        $region40: #{tpu_custom_call.1} parent=27 // pred_fallthru
          _
      $region28: #{tpu_custom_call.1} parent=5 // pred_fallthru
        _
      %p475 = scmp.le.s32.totalorder 2, %s15
      // Predicated region
      $region41: #{tpu_custom_call.1} parent=5 // pred_check
        %p476 = pneg %p475
      $region42: #{tpu_custom_call.1} parent=5 // pred_check_branch
        %478 = sbr.rel (%p476) target = $region44
      $region43: #{tpu_custom_call.1} parent=5 // pred_region
        %s479 = ssub.s32 %s15, 2
        // Predicated region
        $region45: #{tpu_custom_call.1} parent=43 // pred_check
          %p480 = pneg %p91
        $region46: #{tpu_custom_call.1} parent=43 // pred_check_branch
          %482 = sbr.rel (%p480) target = $region48
        $region47: #{tpu_custom_call.1} parent=43 // pred_region
          %s483 = sand.u32 %s76, 1
          %s484 = scalar_lea.sflag [#allocation4], %s483
          %s485 = sand.u32 %s76, 1
          %s486 = smul.addr %s485, 8
          %s487 = scalar_lea.vmem [#allocation7], %s486
          %489 = dma.done %s484, 128
        $region48: #{tpu_custom_call.1} parent=43 // pred_fallthru
          _
      $region44: #{tpu_custom_call.1} parent=5 // pred_fallthru
        _
    $region6: #{tpu_custom_call.1} parent=1 // loop_footer
      %s19 = sadd.s32 1, %s15
    $region7: #{tpu_custom_call.1} parent=1 // loop_footer_branch
      %14 = sbr.rel target = $region3
    $region8: #{tpu_custom_call.1} parent=1 // loop_exit
      _
    %490 = vsyncpa [#allocation3], 1
    %s491 = scalar_lea.sflag [#allocation3], 1
    %492 = vsyncpa %s491, 1
    %493 = vsyncpa [#allocation6], 1
    %494 = vsyncpa [#allocation4], 1
    %s495 = scalar_lea.sflag [#allocation4], 1
    %496 = vsyncpa %s495, 1

</llo_original>
